<compile_context>
chip_gen: v7x
topology: tpu7x:2x2x1
jax: 0.10.0
libtpu: 0.0.40
codegen_flags: <defaults>
</compile_context>

<pallas_src>
import jax
import jax.numpy as jnp
import numpy as np
from jax.experimental import pallas as pl
from jax.experimental.pallas import tpu as pltpu

GN_EPS = 1e-5


def ca_gn_kernel(x_ref, pool_ref, eh_ref, ew_ref, w1_ref, gamma_ref, beta_ref,
                 wh_ref, ww_ref, o_ref):
    # x_ref / o_ref block: (nb*Cp, HWp) -- lane-dense last dim, 8-aligned rows.
    H = eh_ref.shape[0]

    # Adaptive avg-pool over W and over H + concat, as one MXU pass:
    # (nb*Cp, HWp) @ (HWp, H+W).  x cast to bf16 (matches default MXU precision).
    pooled = jnp.dot(x_ref[...].astype(jnp.bfloat16), pool_ref[...],
                     preferred_element_type=jnp.float32)            # (nb*Cp, H+W)

    # conv_1x1 (bias-free), block-diagonal over the nb packed batch elements.
    y = jnp.dot(w1_ref[...], pooled,
                preferred_element_type=jnp.float32)                 # (nb*mip, H+W)

    # GroupNorm(mip, mip): per-(batch, channel) row statistics over H+W.
    mu = jnp.mean(y, axis=1, keepdims=True)
    var = jnp.mean(jnp.square(y - mu), axis=1, keepdims=True)
    y = (y - mu) * jax.lax.rsqrt(var + GN_EPS)
    y = jnp.maximum(y * gamma_ref[...] + beta_ref[...], 0.0)        # affine + ReLU

    # F_h / F_w (bias-free, block-diagonal) + sigmoid on the split halves.
    a_h = jax.nn.sigmoid(jnp.dot(wh_ref[...], y[:, :H],
                                 preferred_element_type=jnp.float32))   # (nb*Cp, H)
    a_w = jax.nn.sigmoid(jnp.dot(ww_ref[...], y[:, H:],
                                 preferred_element_type=jnp.float32))   # (nb*Cp, W)

    # Broadcast the gates back onto the lane-dense H*W axis via constant matmuls
    # and apply them; x is re-read here (not held live across the body).
    gate = (jnp.dot(a_h.astype(jnp.bfloat16), eh_ref[...],
                    preferred_element_type=jnp.float32)
            * jnp.dot(a_w.astype(jnp.bfloat16), ew_ref[...],
                      preferred_element_type=jnp.float32))           # (nb*Cp, HWp)
    o_ref[...] = (x_ref[...] * gate).astype(o_ref.dtype)


def ca_gn_forward(x, params):
    n, c, h, w = x.shape
    hw = h * w
    mip = params["w1"].shape[0]

    hwp = ((hw + 127) // 128) * 128      # lane-align the spatial axis
    cp = ((c + 7) // 8) * 8              # sublane-align the channel axis

    # ---- constant pooling / gate-expansion matrices (host-built, bf16) ----
    hw_idx = np.arange(hw)
    h_idx = hw_idx // w
    w_idx = hw_idx % w
    pool = np.zeros((hwp, h + w), np.float32)
    pool[hw_idx, h_idx] = 1.0 / w                 # mean over W  -> x_h branch
    pool[hw_idx, h + w_idx] = 1.0 / h             # mean over H  -> x_w branch
    eh = np.zeros((h, hwp), np.float32)
    eh[h_idx, hw_idx] = 1.0
    ew = np.zeros((w, hwp), np.float32)
    ew[w_idx, hw_idx] = 1.0
    pool = jnp.asarray(pool, jnp.bfloat16)
    eh = jnp.asarray(eh, jnp.bfloat16)
    ew = jnp.asarray(ew, jnp.bfloat16)

    # ---- generation-aware VMEM / block budgets ----
    try:
        vmem_cap = int(pltpu.get_tpu_info().vmem_capacity_bytes)
    except Exception:
        vmem_cap = 64 << 20                       # conservative (v7x-sized)
    if vmem_cap >= (100 << 20):                   # v5e / v6e: 128 MiB physical
        block_cap, vmem_ceiling = 6 << 20, 100 << 20
    else:                                         # v7x: 64 MiB per TensorCore
        block_cap, vmem_ceiling = 3 << 20, 48 << 20

    # ---- pack several batch elements per grid step ----
    per_elem_bytes = cp * hwp * max(4, x.dtype.itemsize)
    nb = max(1, min(n, 8, block_cap // per_elem_bytes))
    if n >= 2:
        nb = max(1, min(nb, n // 2))              # keep >= 2 grid steps
    while nb > 1 and 12 * (nb * mip) * (nb * cp) > (2 << 20):
        nb -= 1                                   # keep block-diag weights tiny
    n_pad = ((n + nb - 1) // nb) * nb

    # ---- lane/sublane-aligned flattened input slab ----
    xf = x.reshape(n, c, hw)
    if (n_pad, cp, hwp) != (n, c, hw):
        xf = jnp.pad(xf, ((0, n_pad - n), (0, cp - c), (0, hwp - hw)))
    xf = xf.reshape(n_pad * cp, hwp)

    # ---- block-diagonal middle-section weights (per packed batch) ----
    w1 = params["w1"].astype(jnp.float32)         # (mip, c)
    wh = params["wh"].astype(jnp.float32)         # (c, mip)
    ww = params["ww"].astype(jnp.float32)         # (c, mip)
    if cp != c:
        w1 = jnp.pad(w1, ((0, 0), (0, cp - c)))
        wh = jnp.pad(wh, ((0, cp - c), (0, 0)))
        ww = jnp.pad(ww, ((0, cp - c), (0, 0)))
    eye = jnp.eye(nb, dtype=jnp.float32)
    w1b = jnp.kron(eye, w1)                       # (nb*mip, nb*cp)
    whb = jnp.kron(eye, wh)                       # (nb*cp, nb*mip)
    wwb = jnp.kron(eye, ww)                       # (nb*cp, nb*mip)
    gammab = jnp.tile(params["gamma"].astype(jnp.float32), (nb, 1))   # (nb*mip, 1)
    betab = jnp.tile(params["beta"].astype(jnp.float32), (nb, 1))     # (nb*mip, 1)

    consts = [pool, eh, ew, w1b, gammab, betab, whb, wwb]
    # Constants: whole array resident in VMEM once, no per-step double-buffering.
    const_specs = [pl.BlockSpec(memory_space=pltpu.MemorySpace.VMEM)
                   for _ in consts]

    rows = nb * cp
    grid = (n_pad // nb,)

    block_bytes = rows * hwp * 4
    aux_bytes = sum(int(np.prod(a.shape)) * a.dtype.itemsize for a in consts)
    vmem_limit = int(min(max(6 * block_bytes + 2 * aux_bytes + (8 << 20),
                             32 << 20), vmem_ceiling))

    flops = int(4 * n_pad * cp * hwp * (h + w) + 8 * n_pad * cp * hwp)
    bytes_accessed = int(2 * n_pad * cp * hwp * 4 + aux_bytes)
    transcendentals = int(2 * n_pad * cp * (h + w))

    out = pl.pallas_call(
        ca_gn_kernel,
        out_shape=jax.ShapeDtypeStruct((n_pad * cp, hwp), x.dtype),
        grid=grid,
        in_specs=[pl.BlockSpec((rows, hwp), lambda i: (i, 0))] + const_specs,
        out_specs=pl.BlockSpec((rows, hwp), lambda i: (i, 0)),
        compiler_params=pltpu.CompilerParams(
            dimension_semantics=("parallel",),
            vmem_limit_bytes=vmem_limit),
        cost_estimate=pl.CostEstimate(flops=flops,
                                      transcendentals=transcendentals,
                                      bytes_accessed=bytes_accessed),
    )(xf, *consts)

    out = out.reshape(n_pad, cp, hwp)[:n, :c, :hw]
    return out.reshape(n, c, h, w)


def ca_gn_reference(x, p):
    """Pure-JAX reference mirroring the PyTorch forward."""
    n, c, h, w = x.shape
    x_h = jnp.mean(x, axis=3)                              # (N, C, H)
    x_w = jnp.mean(x, axis=2)                              # (N, C, W)
    y = jnp.concatenate([x_h, x_w], axis=2)                # (N, C, H+W)
    y = jnp.einsum("oc,ncs->nos", p["w1"], y)              # conv_1x1, no bias
    mu = jnp.mean(y, axis=2, keepdims=True)
    var = jnp.mean(jnp.square(y - mu), axis=2, keepdims=True)
    y = (y - mu) * jax.lax.rsqrt(var + GN_EPS)
    y = y * p["gamma"][None] + p["beta"][None]             # GroupNorm affine
    y = jnp.maximum(y, 0.0)                                # ReLU
    y_h, y_w = y[:, :, :h], y[:, :, h:]
    s_h = jax.nn.sigmoid(jnp.einsum("om,nms->nos", p["wh"], y_h))   # (N, C, H)
    s_w = jax.nn.sigmoid(jnp.einsum("om,nms->nos", p["ww"], y_w))   # (N, C, W)
    return x * s_h[:, :, :, None] * s_w[:, :, None, :]


def init_params(key, channel, reduction=16):
    mip = max(8, channel // reduction)
    k1, k2, k3 = jax.random.split(key, 3)
    b1 = 1.0 / np.sqrt(channel)   # conv_1x1 fan_in
    b2 = 1.0 / np.sqrt(mip)       # F_h / F_w fan_in
    return {
        "w1": jax.random.uniform(k1, (mip, channel), jnp.float32, -b1, b1),
        "gamma": jnp.ones((mip, 1), jnp.float32),   # GroupNorm defaults
        "beta": jnp.zeros((mip, 1), jnp.float32),
        "wh": jax.random.uniform(k2, (channel, mip), jnp.float32, -b2, b2),
        "ww": jax.random.uniform(k3, (channel, mip), jnp.float32, -b2, b2),
    }


if __name__ == "__main__":
    key = jax.random.PRNGKey(0)
    kx, kp = jax.random.split(key)

    N, C, H, W = 2, 4, 16, 16
    x = jax.random.normal(kx, (N, C, H, W), jnp.float32)
    params = init_params(kp, channel=C, reduction=16)

    out = jax.block_until_ready(ca_gn_forward(x, params))
    ref = jax.block_until_ready(ca_gn_reference(x, params))

    # Tolerance accounts for default (bf16) MXU precision in both the kernel's
    # dots and the reference einsums; semantic bugs would be orders of
    # magnitude above this.
    np.testing.assert_allclose(np.asarray(out), np.asarray(ref),
                               rtol=1e-2, atol=1e-2)
    print("KERNEL_OK")
</pallas_src>

<mosaic_0001>
module attributes {stable_mosaic.version = 11 : i64} {
  func.func @ca_gn_kernel(%arg0: i32, %arg1: memref<8x256xf32, #tpu.memory_space<vmem>>, %arg2: memref<256x32xbf16, #tpu.memory_space<vmem>>, %arg3: memref<16x256xbf16, #tpu.memory_space<vmem>>, %arg4: memref<16x256xbf16, #tpu.memory_space<vmem>>, %arg5: memref<8x8xf32, #tpu.memory_space<vmem>>, %arg6: memref<8x1xf32, #tpu.memory_space<vmem>>, %arg7: memref<8x1xf32, #tpu.memory_space<vmem>>, %arg8: memref<8x8xf32, #tpu.memory_space<vmem>>, %arg9: memref<8x8xf32, #tpu.memory_space<vmem>>, %arg10: memref<8x256xf32, #tpu.memory_space<vmem>>) attributes {dimension_semantics = [#tpu.dimension_semantics<parallel>], iteration_bounds = array<i64: 2>, scalar_prefetch = 0 : i64, scratch_operands = 0 : i64, tpu.core_type = #tpu.core_type<tc>, window_params = [{transform_indices = @transform_0, window_bounds = array<i64: 8, 256>}, {pipeline_mode = #tpu.pipeline_mode<synchronous>, transform_indices = @transform_1, window_bounds = array<i64: 256, 32>}, {pipeline_mode = #tpu.pipeline_mode<synchronous>, transform_indices = @transform_2, window_bounds = array<i64: 16, 256>}, {pipeline_mode = #tpu.pipeline_mode<synchronous>, transform_indices = @transform_3, window_bounds = array<i64: 16, 256>}, {pipeline_mode = #tpu.pipeline_mode<synchronous>, transform_indices = @transform_4, window_bounds = array<i64: 8, 8>}, {pipeline_mode = #tpu.pipeline_mode<synchronous>, transform_indices = @transform_5, window_bounds = array<i64: 8, 1>}, {pipeline_mode = #tpu.pipeline_mode<synchronous>, transform_indices = @transform_6, window_bounds = array<i64: 8, 1>}, {pipeline_mode = #tpu.pipeline_mode<synchronous>, transform_indices = @transform_7, window_bounds = array<i64: 8, 8>}, {pipeline_mode = #tpu.pipeline_mode<synchronous>, transform_indices = @transform_8, window_bounds = array<i64: 8, 8>}, {transform_indices = @transform_9, window_bounds = array<i64: 8, 256>}]} {
    %c0 = arith.constant 0 : index
    %c0_0 = arith.constant 0 : index
    %0 = vector.load %arg1[%c0, %c0_0] : memref<8x256xf32, #tpu.memory_space<vmem>>, vector<8x256xf32>
    %1 = arith.truncf %0 : vector<8x256xf32> to vector<8x256xbf16>
    %c0_1 = arith.constant 0 : index
    %c0_2 = arith.constant 0 : index
    %2 = vector.load %arg2[%c0_1, %c0_2] : memref<256x32xbf16, #tpu.memory_space<vmem>>, vector<256x32xbf16>
    %cst = arith.constant dense<0.000000e+00> : vector<8x32xf32>
    %3 = tpu.matmul %1, %2, %cst {dimension_numbers = #tpu.dot_dimension_numbers<[1], [0], [0], [1], [0, 0, 1, 1], [], []>} : vector<8x256xbf16>, vector<256x32xbf16>, vector<8x32xf32> -> vector<8x32xf32>
    %c0_3 = arith.constant 0 : index
    %c0_4 = arith.constant 0 : index
    %4 = vector.load %arg5[%c0_3, %c0_4] : memref<8x8xf32, #tpu.memory_space<vmem>>, vector<8x8xf32>
    %cst_5 = arith.constant dense<0.000000e+00> : vector<8x32xf32>
    %5 = tpu.matmul %4, %3, %cst_5 {dimension_numbers = #tpu.dot_dimension_numbers<[1], [0], [0], [1], [0, 0, 1, 1], [], []>} : vector<8x8xf32>, vector<8x32xf32>, vector<8x32xf32> -> vector<8x32xf32>
    %cst_6 = arith.constant dense<0.000000e+00> : vector<8xf32>
    %6 = vector.multi_reduction <add>, %5, %cst_6 [1] : vector<8x32xf32> to vector<8xf32>
    %7 = vector.shape_cast %6 : vector<8xf32> to vector<8x1xf32>
    %cst_7 = arith.constant 3.200000e+01 : f32
    %8 = vector.broadcast %cst_7 : f32 to vector<8x1xf32>
    %9 = arith.divf %7, %8 : vector<8x1xf32>
    %10 = vector.broadcast %9 : vector<8x1xf32> to vector<8x32xf32>
    %11 = arith.subf %5, %10 : vector<8x32xf32>
    %12 = arith.mulf %11, %11 : vector<8x32xf32>
    %cst_8 = arith.constant dense<0.000000e+00> : vector<8xf32>
    %13 = vector.multi_reduction <add>, %12, %cst_8 [1] : vector<8x32xf32> to vector<8xf32>
    %14 = vector.shape_cast %13 : vector<8xf32> to vector<8x1xf32>
    %cst_9 = arith.constant 3.200000e+01 : f32
    %15 = vector.broadcast %cst_9 : f32 to vector<8x1xf32>
    %16 = arith.divf %14, %15 : vector<8x1xf32>
    %17 = vector.broadcast %9 : vector<8x1xf32> to vector<8x32xf32>
    %18 = arith.subf %5, %17 : vector<8x32xf32>
    %cst_10 = arith.constant 9.99999974E-6 : f32
    %19 = vector.broadcast %cst_10 : f32 to vector<8x1xf32>
    %20 = arith.addf %16, %19 : vector<8x1xf32>
    %21 = math.rsqrt %20 : vector<8x1xf32>
    %22 = vector.broadcast %21 : vector<8x1xf32> to vector<8x32xf32>
    %23 = arith.mulf %18, %22 : vector<8x32xf32>
    %c0_11 = arith.constant 0 : index
    %c0_12 = arith.constant 0 : index
    %24 = vector.load %arg6[%c0_11, %c0_12] : memref<8x1xf32, #tpu.memory_space<vmem>>, vector<8x1xf32>
    %25 = vector.broadcast %24 : vector<8x1xf32> to vector<8x32xf32>
    %26 = arith.mulf %23, %25 : vector<8x32xf32>
    %c0_13 = arith.constant 0 : index
    %c0_14 = arith.constant 0 : index
    %27 = vector.load %arg7[%c0_13, %c0_14] : memref<8x1xf32, #tpu.memory_space<vmem>>, vector<8x1xf32>
    %28 = vector.broadcast %27 : vector<8x1xf32> to vector<8x32xf32>
    %29 = arith.addf %26, %28 : vector<8x32xf32>
    %cst_15 = arith.constant 0.000000e+00 : f32
    %30 = vector.broadcast %cst_15 : f32 to vector<8x32xf32>
    %31 = arith.maximumf %29, %30 : vector<8x32xf32>
    %c0_16 = arith.constant 0 : index
    %c0_17 = arith.constant 0 : index
    %32 = vector.load %arg8[%c0_16, %c0_17] : memref<8x8xf32, #tpu.memory_space<vmem>>, vector<8x8xf32>
    %33 = vector.extract_strided_slice %31 {offsets = [0, 0], sizes = [8, 16], strides = [1, 1]} : vector<8x32xf32> to vector<8x16xf32>
    %cst_18 = arith.constant dense<0.000000e+00> : vector<8x16xf32>
    %34 = tpu.matmul %32, %33, %cst_18 {dimension_numbers = #tpu.dot_dimension_numbers<[1], [0], [0], [1], [0, 0, 1, 1], [], []>} : vector<8x8xf32>, vector<8x16xf32>, vector<8x16xf32> -> vector<8x16xf32>
    %35 = arith.negf %34 : vector<8x16xf32>
    %36 = math.exp %35 : vector<8x16xf32>
    %cst_19 = arith.constant 1.000000e+00 : f32
    %37 = vector.broadcast %cst_19 : f32 to vector<8x16xf32>
    %38 = arith.addf %37, %36 : vector<8x16xf32>
    %39 = arith.divf %37, %38 : vector<8x16xf32>
    %c0_20 = arith.constant 0 : index
    %c0_21 = arith.constant 0 : index
    %40 = vector.load %arg9[%c0_20, %c0_21] : memref<8x8xf32, #tpu.memory_space<vmem>>, vector<8x8xf32>
    %41 = vector.extract_strided_slice %31 {offsets = [0, 16], sizes = [8, 16], strides = [1, 1]} : vector<8x32xf32> to vector<8x16xf32>
    %cst_22 = arith.constant dense<0.000000e+00> : vector<8x16xf32>
    %42 = tpu.matmul %40, %41, %cst_22 {dimension_numbers = #tpu.dot_dimension_numbers<[1], [0], [0], [1], [0, 0, 1, 1], [], []>} : vector<8x8xf32>, vector<8x16xf32>, vector<8x16xf32> -> vector<8x16xf32>
    %43 = arith.negf %42 : vector<8x16xf32>
    %44 = math.exp %43 : vector<8x16xf32>
    %cst_23 = arith.constant 1.000000e+00 : f32
    %45 = vector.broadcast %cst_23 : f32 to vector<8x16xf32>
    %46 = arith.addf %45, %44 : vector<8x16xf32>
    %47 = arith.divf %45, %46 : vector<8x16xf32>
    %48 = arith.truncf %39 : vector<8x16xf32> to vector<8x16xbf16>
    %c0_24 = arith.constant 0 : index
    %c0_25 = arith.constant 0 : index
    %49 = vector.load %arg3[%c0_24, %c0_25] : memref<16x256xbf16, #tpu.memory_space<vmem>>, vector<16x256xbf16>
    %cst_26 = arith.constant dense<0.000000e+00> : vector<8x256xf32>
    %50 = tpu.matmul %48, %49, %cst_26 {dimension_numbers = #tpu.dot_dimension_numbers<[1], [0], [0], [1], [0, 0, 1, 1], [], []>} : vector<8x16xbf16>, vector<16x256xbf16>, vector<8x256xf32> -> vector<8x256xf32>
    %51 = arith.truncf %47 : vector<8x16xf32> to vector<8x16xbf16>
    %c0_27 = arith.constant 0 : index
    %c0_28 = arith.constant 0 : index
    %52 = vector.load %arg4[%c0_27, %c0_28] : memref<16x256xbf16, #tpu.memory_space<vmem>>, vector<16x256xbf16>
    %cst_29 = arith.constant dense<0.000000e+00> : vector<8x256xf32>
    %53 = tpu.matmul %51, %52, %cst_29 {dimension_numbers = #tpu.dot_dimension_numbers<[1], [0], [0], [1], [0, 0, 1, 1], [], []>} : vector<8x16xbf16>, vector<16x256xbf16>, vector<8x256xf32> -> vector<8x256xf32>
    %54 = arith.mulf %50, %53 : vector<8x256xf32>
    %c0_30 = arith.constant 0 : index
    %c0_31 = arith.constant 0 : index
    %55 = vector.load %arg1[%c0_30, %c0_31] : memref<8x256xf32, #tpu.memory_space<vmem>>, vector<8x256xf32>
    %56 = arith.mulf %55, %54 : vector<8x256xf32>
    %c0_32 = arith.constant 0 : index
    %c0_33 = arith.constant 0 : index
    %57 = vector.load %arg10[%c0_32, %c0_33] : memref<8x256xf32, #tpu.memory_space<vmem>>, vector<8x256xf32>
    tpu.vector_store %arg10[%c0_32, %c0_33], %56 {strides = array<i32>} : memref<8x256xf32, #tpu.memory_space<vmem>>, vector<8x256xf32>,
    return
  }
  func.func @transform_0(%arg0: i32) -> (i32, i32) {
    %c0_i32 = arith.constant 0 : i32
    %c0_i32_0 = arith.constant 0 : i32
    return %arg0, %c0_i32 : i32, i32
  }
  func.func @transform_1(%arg0: i32) -> (i32, i32) {
    %c0_i32 = arith.constant 0 : i32
    %c0_i32_0 = arith.constant 0 : i32
    %c0_i32_1 = arith.constant 0 : i32
    return %c0_i32, %c0_i32_0 : i32, i32
  }
  func.func @transform_2(%arg0: i32) -> (i32, i32) {
    %c0_i32 = arith.constant 0 : i32
    %c0_i32_0 = arith.constant 0 : i32
    %c0_i32_1 = arith.constant 0 : i32
    return %c0_i32, %c0_i32_0 : i32, i32
  }
  func.func @transform_3(%arg0: i32) -> (i32, i32) {
    %c0_i32 = arith.constant 0 : i32
    %c0_i32_0 = arith.constant 0 : i32
    %c0_i32_1 = arith.constant 0 : i32
    return %c0_i32, %c0_i32_0 : i32, i32
  }
  func.func @transform_4(%arg0: i32) -> (i32, i32) {
    %c0_i32 = arith.constant 0 : i32
    %c0_i32_0 = arith.constant 0 : i32
    %c0_i32_1 = arith.constant 0 : i32
    return %c0_i32, %c0_i32_0 : i32, i32
  }
  func.func @transform_5(%arg0: i32) -> (i32, i32) {
    %c0_i32 = arith.constant 0 : i32
    %c0_i32_0 = arith.constant 0 : i32
    %c0_i32_1 = arith.constant 0 : i32
    return %c0_i32, %c0_i32_0 : i32, i32
  }
  func.func @transform_6(%arg0: i32) -> (i32, i32) {
    %c0_i32 = arith.constant 0 : i32
    %c0_i32_0 = arith.constant 0 : i32
    %c0_i32_1 = arith.constant 0 : i32
    return %c0_i32, %c0_i32_0 : i32, i32
  }
  func.func @transform_7(%arg0: i32) -> (i32, i32) {
    %c0_i32 = arith.constant 0 : i32
    %c0_i32_0 = arith.constant 0 : i32
    %c0_i32_1 = arith.constant 0 : i32
    return %c0_i32, %c0_i32_0 : i32, i32
  }
  func.func @transform_8(%arg0: i32) -> (i32, i32) {
    %c0_i32 = arith.constant 0 : i32
    %c0_i32_0 = arith.constant 0 : i32
    %c0_i32_1 = arith.constant 0 : i32
    return %c0_i32, %c0_i32_0 : i32, i32
  }
  func.func @transform_9(%arg0: i32) -> (i32, i32) {
    %c0_i32 = arith.constant 0 : i32
    %c0_i32_0 = arith.constant 0 : i32
    return %arg0, %c0_i32 : i32, i32
  }
}

</mosaic_0001>

<llo_original>
// kernel: tpu_custom_call.1
$region0: #{tpu_custom_call.1}
  #allocation0 [shape = 'u32[]', space=smem, size = 0x4, offset = 0x4, fixed_abs, tag = 'smem constant byte address 0x4 - core index']
  #allocation1 [shape = 'u32[144,128]{1,0:T(1,128)}', space=vmem, size = 0x12000, scoped, tag = 'internal scratch']
  %s0 = inlined_call_operand.vmem [shape: f32[16,256], index: 0, kind: input, shape index: {}]
  %s1 = inlined_call_operand.vmem [shape: bf16[256,32], index: 1, kind: input, shape index: {}]
  %s2 = inlined_call_operand.vmem [shape: bf16[16,256], index: 2, kind: input, shape index: {}]
  %s3 = inlined_call_operand.vmem [shape: bf16[16,256], index: 3, kind: input, shape index: {}]
  %s4 = inlined_call_operand.vmem [shape: f32[8,8], index: 4, kind: input, shape index: {}]
  %s5 = inlined_call_operand.vmem [shape: f32[8,1], index: 5, kind: input, shape index: {}]
  %s6 = inlined_call_operand.vmem [shape: f32[8,1], index: 6, kind: input, shape index: {}]
  %s7 = inlined_call_operand.vmem [shape: f32[8,8], index: 7, kind: input, shape index: {}]
  %s8 = inlined_call_operand.vmem [shape: f32[8,8], index: 8, kind: input, shape index: {}]
  %s9 = inlined_call_operand.hbm [shape: f32[16,256], index: 9, kind: output, shape index: {}]
  %s10 = sld [smem:[#allocation0]]
  $region69: #{tpu_custom_call.1} parent=0
    _
  %s12 = ssub.s32 1, %s10
  %s13 = scalar_select 0, %s12, %s10
  $region1: #{tpu_custom_call.1} parent=0
    #allocation2 [shape = 'u8[16384]{0}', space=vmem, size = 0x4000, scoped, tag = 'output window, operand 0']
    #allocation3 [shape = 's32[2]{0}', space=sflag, size = 0x8, scoped, tag = 'scoped memory for tpu_custom_call.1']
    %14 = vsyncpa [#allocation3], 0
    %s15 = scalar_lea.sflag [#allocation3], 1
    %16 = vsyncpa %s15, 0
    loop: start=0, step=1, limit=4
    $region2: #{tpu_custom_call.1} parent=1 // loop_pre_header
      _
    $region3: #{tpu_custom_call.1} parent=1 // loop_header
      %s18 = sphi 0, %s22
      %p19 = scmp.ge.s32.totalorder %s18, 4
      %s28 = sphi 0, %s30
      %s31 = sphi 0, %s28
      %s32 = sphi 0, %s31
      %s48 = sphi 0, %s32
      %s52 = sphi 0, %s52
      %s54 = sphi 0, %s52
      %s55 = sphi 0, %s54
      %s69 = sphi 0, %s55
      %s73 = sphi 0, %s73
      %s75 = sphi 0, %s73
      %s76 = sphi 0, %s75
      %s90 = sphi 0, %s76
      %s94 = sphi 0, %s94
      %s96 = sphi 0, %s94
      %s97 = sphi 0, %s96
      %s111 = sphi 0, %s97
      %s115 = sphi 0, %s115
      %s117 = sphi 0, %s115
      %s118 = sphi 0, %s117
      %s132 = sphi 0, %s118
      %s136 = sphi 0, %s136
      %s138 = sphi 0, %s136
      %s139 = sphi 0, %s138
      %s153 = sphi 0, %s139
      %s157 = sphi 0, %s157
      %s159 = sphi 0, %s157
      %s160 = sphi 0, %s159
      %s174 = sphi 0, %s160
      %s178 = sphi 0, %s178
      %s180 = sphi 0, %s178
      %s181 = sphi 0, %s180
      %s195 = sphi 0, %s181
      %s199 = sphi 0, %s199
      %s201 = sphi 0, %s199
      %s202 = sphi 0, %s201
      %s216 = sphi 0, %s202
      %s222 = sphi 0, %s224
      %s225 = sphi 0, %s222
      %s226 = sphi 0, %s225
      %s242 = sphi 0, %s226
    $region4: #{tpu_custom_call.1} parent=1 // loop_header_branch
      %21 = sbr.rel (%p19) target = $region8
    $region5: #{tpu_custom_call.1} parent=1 // loop_body
      %s23 = ssub.s32 %s18, 1
      %s24 = ssub.s32 %s18, 2
      %s25 = sadd.s32 %s18, 1
      %s26 = ssub.s32 %s18, %s25
      %p27 = scmp.eq.s32.totalorder %s26, 0
      %s29 = sadd.s32 %s28, 1
      %s30 = scalar_select %p27, %s28, %s29
      %p33 = pneg %p27
      %p34 = scmp.eq.s32.totalorder %s18, 1
      %p35 = por %p33, %p34
      %p36 = scmp.ne.s32.totalorder %s28, %s31
      %p37 = scmp.eq.s32.totalorder %s18, 0
      %p38 = por %p36, %p37
      %p39 = scmp.ne.s32.totalorder %s28, %s31
      %p40 = scmp.eq.s32.totalorder %s23, 1
      %p41 = por %p39, %p40
      %p42 = scmp.ne.s32.totalorder %s31, %s32
      %p43 = scmp.eq.s32.totalorder %s23, 0
      %p44 = por %p42, %p43
      %p45 = scmp.ne.s32.totalorder %s31, %s32
      %p46 = scmp.eq.s32.totalorder %s24, 1
      %p47 = por %p45, %p46
      %p49 = scmp.ne.s32.totalorder %s32, %s48
      %p50 = scmp.eq.s32.totalorder %s24, 0
      %p51 = por %p49, %p50
      %s53 = sadd.s32 %s52, 1
      %p56 = scmp.eq.s32.totalorder %s18, 1
      %p57 = scmp.ne.s32.totalorder %s52, %s54
      %p58 = scmp.eq.s32.totalorder %s18, 0
      %p59 = por %p57, %p58
      %p60 = scmp.ne.s32.totalorder %s52, %s54
      %p61 = scmp.eq.s32.totalorder %s23, 1
      %p62 = por %p60, %p61
      %p63 = scmp.ne.s32.totalorder %s54, %s55
      %p64 = scmp.eq.s32.totalorder %s23, 0
      %p65 = por %p63, %p64
      %p66 = scmp.ne.s32.totalorder %s54, %s55
      %p67 = scmp.eq.s32.totalorder %s24, 1
      %p68 = por %p66, %p67
      %p70 = scmp.ne.s32.totalorder %s55, %s69
      %p71 = scmp.eq.s32.totalorder %s24, 0
      %p72 = por %p70, %p71
      %s74 = sadd.s32 %s73, 1
      %p77 = scmp.eq.s32.totalorder %s18, 1
      %p78 = scmp.ne.s32.totalorder %s73, %s75
      %p79 = scmp.eq.s32.totalorder %s18, 0
      %p80 = por %p78, %p79
      %p81 = scmp.ne.s32.totalorder %s73, %s75
      %p82 = scmp.eq.s32.totalorder %s23, 1
      %p83 = por %p81, %p82
      %p84 = scmp.ne.s32.totalorder %s75, %s76
      %p85 = scmp.eq.s32.totalorder %s23, 0
      %p86 = por %p84, %p85
      %p87 = scmp.ne.s32.totalorder %s75, %s76
      %p88 = scmp.eq.s32.totalorder %s24, 1
      %p89 = por %p87, %p88
      %p91 = scmp.ne.s32.totalorder %s76, %s90
      %p92 = scmp.eq.s32.totalorder %s24, 0
      %p93 = por %p91, %p92
      %s95 = sadd.s32 %s94, 1
      %p98 = scmp.eq.s32.totalorder %s18, 1
      %p99 = scmp.ne.s32.totalorder %s94, %s96
      %p100 = scmp.eq.s32.totalorder %s18, 0
      %p101 = por %p99, %p100
      %p102 = scmp.ne.s32.totalorder %s94, %s96
      %p103 = scmp.eq.s32.totalorder %s23, 1
      %p104 = por %p102, %p103
      %p105 = scmp.ne.s32.totalorder %s96, %s97
      %p106 = scmp.eq.s32.totalorder %s23, 0
      %p107 = por %p105, %p106
      %p108 = scmp.ne.s32.totalorder %s96, %s97
      %p109 = scmp.eq.s32.totalorder %s24, 1
      %p110 = por %p108, %p109
      %p112 = scmp.ne.s32.totalorder %s97, %s111
      %p113 = scmp.eq.s32.totalorder %s24, 0
      %p114 = por %p112, %p113
      %s116 = sadd.s32 %s115, 1
      %p119 = scmp.eq.s32.totalorder %s18, 1
      %p120 = scmp.ne.s32.totalorder %s115, %s117
      %p121 = scmp.eq.s32.totalorder %s18, 0
      %p122 = por %p120, %p121
      %p123 = scmp.ne.s32.totalorder %s115, %s117
      %p124 = scmp.eq.s32.totalorder %s23, 1
      %p125 = por %p123, %p124
      %p126 = scmp.ne.s32.totalorder %s117, %s118
      %p127 = scmp.eq.s32.totalorder %s23, 0
      %p128 = por %p126, %p127
      %p129 = scmp.ne.s32.totalorder %s117, %s118
      %p130 = scmp.eq.s32.totalorder %s24, 1
      %p131 = por %p129, %p130
      %p133 = scmp.ne.s32.totalorder %s118, %s132
      %p134 = scmp.eq.s32.totalorder %s24, 0
      %p135 = por %p133, %p134
      %s137 = sadd.s32 %s136, 1
      %p140 = scmp.eq.s32.totalorder %s18, 1
      %p141 = scmp.ne.s32.totalorder %s136, %s138
      %p142 = scmp.eq.s32.totalorder %s18, 0
      %p143 = por %p141, %p142
      %p144 = scmp.ne.s32.totalorder %s136, %s138
      %p145 = scmp.eq.s32.totalorder %s23, 1
      %p146 = por %p144, %p145
      %p147 = scmp.ne.s32.totalorder %s138, %s139
      %p148 = scmp.eq.s32.totalorder %s23, 0
      %p149 = por %p147, %p148
      %p150 = scmp.ne.s32.totalorder %s138, %s139
      %p151 = scmp.eq.s32.totalorder %s24, 1
      %p152 = por %p150, %p151
      %p154 = scmp.ne.s32.totalorder %s139, %s153
      %p155 = scmp.eq.s32.totalorder %s24, 0
      %p156 = por %p154, %p155
      %s158 = sadd.s32 %s157, 1
      %p161 = scmp.eq.s32.totalorder %s18, 1
      %p162 = scmp.ne.s32.totalorder %s157, %s159
      %p163 = scmp.eq.s32.totalorder %s18, 0
      %p164 = por %p162, %p163
      %p165 = scmp.ne.s32.totalorder %s157, %s159
      %p166 = scmp.eq.s32.totalorder %s23, 1
      %p167 = por %p165, %p166
      %p168 = scmp.ne.s32.totalorder %s159, %s160
      %p169 = scmp.eq.s32.totalorder %s23, 0
      %p170 = por %p168, %p169
      %p171 = scmp.ne.s32.totalorder %s159, %s160
      %p172 = scmp.eq.s32.totalorder %s24, 1
      %p173 = por %p171, %p172
      %p175 = scmp.ne.s32.totalorder %s160, %s174
      %p176 = scmp.eq.s32.totalorder %s24, 0
      %p177 = por %p175, %p176
      %s179 = sadd.s32 %s178, 1
      %p182 = scmp.eq.s32.totalorder %s18, 1
      %p183 = scmp.ne.s32.totalorder %s178, %s180
      %p184 = scmp.eq.s32.totalorder %s18, 0
      %p185 = por %p183, %p184
      %p186 = scmp.ne.s32.totalorder %s178, %s180
      %p187 = scmp.eq.s32.totalorder %s23, 1
      %p188 = por %p186, %p187
      %p189 = scmp.ne.s32.totalorder %s180, %s181
      %p190 = scmp.eq.s32.totalorder %s23, 0
      %p191 = por %p189, %p190
      %p192 = scmp.ne.s32.totalorder %s180, %s181
      %p193 = scmp.eq.s32.totalorder %s24, 1
      %p194 = por %p192, %p193
      %p196 = scmp.ne.s32.totalorder %s181, %s195
      %p197 = scmp.eq.s32.totalorder %s24, 0
      %p198 = por %p196, %p197
      %s200 = sadd.s32 %s199, 1
      %p203 = scmp.eq.s32.totalorder %s18, 1
      %p204 = scmp.ne.s32.totalorder %s199, %s201
      %p205 = scmp.eq.s32.totalorder %s18, 0
      %p206 = por %p204, %p205
      %p207 = scmp.ne.s32.totalorder %s199, %s201
      %p208 = scmp.eq.s32.totalorder %s23, 1
      %p209 = por %p207, %p208
      %p210 = scmp.ne.s32.totalorder %s201, %s202
      %p211 = scmp.eq.s32.totalorder %s23, 0
      %p212 = por %p210, %p211
      %p213 = scmp.ne.s32.totalorder %s201, %s202
      %p214 = scmp.eq.s32.totalorder %s24, 1
      %p215 = por %p213, %p214
      %p217 = scmp.ne.s32.totalorder %s202, %s216
      %p218 = scmp.eq.s32.totalorder %s24, 0
      %p219 = por %p217, %p218
      %s220 = ssub.s32 %s18, %s25
      %p221 = scmp.eq.s32.totalorder %s220, 0
      %s223 = sadd.s32 %s222, 1
      %s224 = scalar_select %p221, %s222, %s223
      %p227 = pneg %p221
      %p228 = scmp.eq.s32.totalorder %s18, 1
      %p229 = por %p227, %p228
      %p230 = scmp.ne.s32.totalorder %s222, %s225
      %p231 = scmp.eq.s32.totalorder %s18, 0
      %p232 = por %p230, %p231
      %p233 = scmp.ne.s32.totalorder %s222, %s225
      %p234 = scmp.eq.s32.totalorder %s23, 1
      %p235 = por %p233, %p234
      %p236 = scmp.ne.s32.totalorder %s225, %s226
      %p237 = scmp.eq.s32.totalorder %s23, 0
      %p238 = por %p236, %p237
      %p239 = scmp.ne.s32.totalorder %s225, %s226
      %p240 = scmp.eq.s32.totalorder %s24, 1
      %p241 = por %p239, %p240
      %p243 = scmp.ne.s32.totalorder %s226, %s242
      %p244 = scmp.eq.s32.totalorder %s24, 0
      %p245 = por %p243, %p244
      %p246 = scmp.le.s32.totalorder 1, %s18
      %p247 = scmp.lt.s32.totalorder %s18, 3
      %p248 = pnand %p246, %p247
      %p249 = pneg %p248
      // Predicated region
      $region9: #{tpu_custom_call.1} parent=5 // pred_check
        _
      $region10: #{tpu_custom_call.1} parent=5 // pred_check_branch
        %251 = sbr.rel (%p248) target = $region12
      $region11: #{tpu_custom_call.1} parent=5 // pred_region
        %s252 = ssub.s32 %s18, 1
        // Predicated region
        $region13: #{tpu_custom_call.1} parent=11 // pred_check
          %p253 = pneg %p65
        $region14: #{tpu_custom_call.1} parent=11 // pred_check_branch
          %255 = sbr.rel (%p253) target = $region16
        $region15: #{tpu_custom_call.1} parent=11 // pred_region
          _
        $region16: #{tpu_custom_call.1} parent=11 // pred_fallthru
          _
        // Predicated region
        $region17: #{tpu_custom_call.1} parent=11 // pred_check
          %p256 = pneg %p86
        $region18: #{tpu_custom_call.1} parent=11 // pred_check_branch
          %258 = sbr.rel (%p256) target = $region20
        $region19: #{tpu_custom_call.1} parent=11 // pred_region
          _
        $region20: #{tpu_custom_call.1} parent=11 // pred_fallthru
          _
        // Predicated region
        $region21: #{tpu_custom_call.1} parent=11 // pred_check
          %p259 = pneg %p107
        $region22: #{tpu_custom_call.1} parent=11 // pred_check_branch
          %261 = sbr.rel (%p259) target = $region24
        $region23: #{tpu_custom_call.1} parent=11 // pred_region
          _
        $region24: #{tpu_custom_call.1} parent=11 // pred_fallthru
          _
        // Predicated region
        $region25: #{tpu_custom_call.1} parent=11 // pred_check
          %p262 = pneg %p128
        $region26: #{tpu_custom_call.1} parent=11 // pred_check_branch
          %264 = sbr.rel (%p262) target = $region28
        $region27: #{tpu_custom_call.1} parent=11 // pred_region
          _
        $region28: #{tpu_custom_call.1} parent=11 // pred_fallthru
          _
        // Predicated region
        $region29: #{tpu_custom_call.1} parent=11 // pred_check
          %p265 = pneg %p149
        $region30: #{tpu_custom_call.1} parent=11 // pred_check_branch
          %267 = sbr.rel (%p265) target = $region32
        $region31: #{tpu_custom_call.1} parent=11 // pred_region
          _
        $region32: #{tpu_custom_call.1} parent=11 // pred_fallthru
          _
        // Predicated region
        $region33: #{tpu_custom_call.1} parent=11 // pred_check
          %p268 = pneg %p170
        $region34: #{tpu_custom_call.1} parent=11 // pred_check_branch
          %270 = sbr.rel (%p268) target = $region36
        $region35: #{tpu_custom_call.1} parent=11 // pred_region
          _
        $region36: #{tpu_custom_call.1} parent=11 // pred_fallthru
          _
        // Predicated region
        $region37: #{tpu_custom_call.1} parent=11 // pred_check
          %p271 = pneg %p191
        $region38: #{tpu_custom_call.1} parent=11 // pred_check_branch
          %273 = sbr.rel (%p271) target = $region40
        $region39: #{tpu_custom_call.1} parent=11 // pred_region
          _
        $region40: #{tpu_custom_call.1} parent=11 // pred_fallthru
          _
        // Predicated region
        $region41: #{tpu_custom_call.1} parent=11 // pred_check
          %p274 = pneg %p212
        $region42: #{tpu_custom_call.1} parent=11 // pred_check_branch
          %276 = sbr.rel (%p274) target = $region44
        $region43: #{tpu_custom_call.1} parent=11 // pred_region
          _
        $region44: #{tpu_custom_call.1} parent=11 // pred_fallthru
          _
      $region12: #{tpu_custom_call.1} parent=5 // pred_fallthru
        _
      %p277 = scmp.lt.s32.totalorder %s18, 2
      // Predicated region
      $region45: #{tpu_custom_call.1} parent=5 // pred_check
        %p278 = pneg %p277
      $region46: #{tpu_custom_call.1} parent=5 // pred_check_branch
        %280 = sbr.rel (%p278) target = $region48
      $region47: #{tpu_custom_call.1} parent=5 // pred_region
        // Predicated region
        $region49: #{tpu_custom_call.1} parent=47 // pred_check
          %p281 = pneg %p38
        $region50: #{tpu_custom_call.1} parent=47 // pred_check_branch
          %283 = sbr.rel (%p281) target = $region52
        $region51: #{tpu_custom_call.1} parent=47 // pred_region
          %p284 = scmp.lt.s32.totalorder %s18, 1
          %s285 = scalar_select %p284, %s18, 1
          %s286 = smul.addr %s285, 2
          %s287 = smul.addr %s286, 8
          %s288 = scalar_lea.vmem %s0, %s287
        $region52: #{tpu_custom_call.1} parent=47 // pred_fallthru
          _
      $region48: #{tpu_custom_call.1} parent=5 // pred_fallthru
        _
      %p289 = scmp.le.s32.totalorder 1, %s18
      %p290 = scmp.lt.s32.totalorder %s18, 3
      %p291 = pnand %p289, %p290
      %p292 = pneg %p291
      // Predicated region
      $region53: #{tpu_custom_call.1} parent=5 // pred_check
        _
      $region54: #{tpu_custom_call.1} parent=5 // pred_check_branch
        %294 = sbr.rel (%p291) target = $region56
      $region55: #{tpu_custom_call.1} parent=5 // pred_region
        %s295 = ssub.s32 %s18, 1
        %p296 = scmp.lt.s32.totalorder %s23, 1
        %s297 = scalar_select %p296, %s23, 1
        %s298 = smul.addr %s297, 2
        %s299 = smul.addr %s298, 8
        %s300 = scalar_lea.vmem %s0, %s299
        %p301 = pneg %p44
        %p302 = pneg %p41
        %p303 = pneg %p65
        %p304 = pneg %p62
        %p305 = pneg %p86
        %p306 = pneg %p83
        %p307 = pneg %p107
        %p308 = pneg %p104
        %p309 = pneg %p128
        %p310 = pneg %p125
        %p311 = pneg %p149
        %p312 = pneg %p146
        %p313 = pneg %p170
        %p314 = pneg %p167
        %p315 = pneg %p191
        %p316 = pneg %p188
        %p317 = pneg %p212
        %p318 = pneg %p209
        %p319 = pneg %p238
        %p320 = pneg %p235
        %s321 = sand.u32 %s225, 1
        %s322 = scalar_lea.sflag [#allocation3], %s321
        %s323 = sand.u32 %s225, 1
        %s324 = smul.addr %s323, 16
        %s325 = scalar_lea.vmem [#allocation2], %s324
        %p326 = scmp.lt.s32.totalorder %s23, 1
        %s327 = scalar_select %p326, %s23, 1
        %s328 = smul.addr %s327, 2
        %s329 = smul.addr %s328, 8
        %s330 = scalar_lea.vmem %s0, %s329
        %v332 = vld [vmem:[%s330] sm:$0xff]
        %v333 = vld [vmem:[%s330 + $0x8] sm:$0xff]
        %v334 = vpack.c.bf16 %v332, %v332
        %v335 = vpack.c.bf16 %v333, %v333
        %v336 = vld [vmem:[%s1] sm:$0xf]
        %v337 = vld [vmem:[%s1 + $0x4] sm:$0xf]
        %v338 = vld [vmem:[%s1 + $0x8] sm:$0xf]
        %v339 = vld [vmem:[%s1 + $0xc] sm:$0xf]
        %v340 = vld [vmem:[%s1 + $0x10] sm:$0xf]
        %v341 = vld [vmem:[%s1 + $0x14] sm:$0xf]
        %v342 = vld [vmem:[%s1 + $0x18] sm:$0xf]
        %v343 = vld [vmem:[%s1 + $0x1c] sm:$0xf]
        %v344 = vld [vmem:[%s1 + $0x20] sm:$0xf]
        %v345 = vld [vmem:[%s1 + $0x24] sm:$0xf]
        %v346 = vld [vmem:[%s1 + $0x28] sm:$0xf]
        %v347 = vld [vmem:[%s1 + $0x2c] sm:$0xf]
        %v348 = vld [vmem:[%s1 + $0x30] sm:$0xf]
        %v349 = vld [vmem:[%s1 + $0x34] sm:$0xf]
        %v350 = vld [vmem:[%s1 + $0x38] sm:$0xf]
        %v351 = vld [vmem:[%s1 + $0x3c] sm:$0xf]
        %v352 = vld [vmem:[%s1 + $0x40] sm:$0xf]
        %v353 = vld [vmem:[%s1 + $0x44] sm:$0xf]
        %v354 = vld [vmem:[%s1 + $0x48] sm:$0xf]
        %v355 = vld [vmem:[%s1 + $0x4c] sm:$0xf]
        %v356 = vld [vmem:[%s1 + $0x50] sm:$0xf]
        %v357 = vld [vmem:[%s1 + $0x54] sm:$0xf]
        %v358 = vld [vmem:[%s1 + $0x58] sm:$0xf]
        %v359 = vld [vmem:[%s1 + $0x5c] sm:$0xf]
        %v360 = vld [vmem:[%s1 + $0x60] sm:$0xf]
        %v361 = vld [vmem:[%s1 + $0x64] sm:$0xf]
        %v362 = vld [vmem:[%s1 + $0x68] sm:$0xf]
        %v363 = vld [vmem:[%s1 + $0x6c] sm:$0xf]
        %v364 = vld [vmem:[%s1 + $0x70] sm:$0xf]
        %v365 = vld [vmem:[%s1 + $0x74] sm:$0xf]
        %v366 = vld [vmem:[%s1 + $0x78] sm:$0xf]
        %v367 = vld [vmem:[%s1 + $0x7c] sm:$0xf]
        %v400 = vunpack.c.l.b16 %v336
        %v401 = vunpack.c.l.b16 %v337
        %v402 = vunpack.c.l.b16 %v338
        %v403 = vunpack.c.l.b16 %v339
        %v404 = vunpack.c.l.b16 %v340
        %v405 = vunpack.c.l.b16 %v341
        %v406 = vunpack.c.l.b16 %v342
        %v407 = vunpack.c.l.b16 %v343
        %v408 = vunpack.c.l.b16 %v344
        %v409 = vunpack.c.l.b16 %v345
        %v410 = vunpack.c.l.b16 %v346
        %v411 = vunpack.c.l.b16 %v347
        %v412 = vunpack.c.l.b16 %v348
        %v413 = vunpack.c.l.b16 %v349
        %v414 = vunpack.c.l.b16 %v350
        %v415 = vunpack.c.l.b16 %v351
        %v416 = vunpack.c.l.b16 %v352
        %v417 = vunpack.c.l.b16 %v353
        %v418 = vunpack.c.l.b16 %v354
        %v419 = vunpack.c.l.b16 %v355
        %v420 = vunpack.c.l.b16 %v356
        %v421 = vunpack.c.l.b16 %v357
        %v422 = vunpack.c.l.b16 %v358
        %v423 = vunpack.c.l.b16 %v359
        %v424 = vunpack.c.l.b16 %v360
        %v425 = vunpack.c.l.b16 %v361
        %v426 = vunpack.c.l.b16 %v362
        %v427 = vunpack.c.l.b16 %v363
        %v428 = vunpack.c.l.b16 %v364
        %v429 = vunpack.c.l.b16 %v365
        %v430 = vunpack.c.l.b16 %v366
        %v431 = vunpack.c.l.b16 %v367
        %v432 = vpack.c.b16 %v401, %v400
        %v433 = vpack.c.b16 %v403, %v402
        %v434 = vpack.c.b16 %v405, %v404
        %v435 = vpack.c.b16 %v407, %v406
        %v436 = vpack.c.b16 %v409, %v408
        %v437 = vpack.c.b16 %v411, %v410
        %v438 = vpack.c.b16 %v413, %v412
        %v439 = vpack.c.b16 %v415, %v414
        %v440 = vpack.c.b16 %v417, %v416
        %v441 = vpack.c.b16 %v419, %v418
        %v442 = vpack.c.b16 %v421, %v420
        %v443 = vpack.c.b16 %v423, %v422
        %v444 = vpack.c.b16 %v425, %v424
        %v445 = vpack.c.b16 %v427, %v426
        %v446 = vpack.c.b16 %v429, %v428
        %v447 = vpack.c.b16 %v431, %v430
        %464 = vmatprep.subr.bf16.mxu0 0
        %465 = vmatpush1.bf16.msra.mxu0 %v432
        %466 = vmatprep.subr.bf16.mxu0 0
        %467 = vmatpush1.bf16.msra.mxu0 %v433
        %468 = vmatprep.subr.bf16.mxu0 0
        %469 = vmatpush1.bf16.msra.mxu0 %v434
        %470 = vmatprep.subr.bf16.mxu0 0
        %471 = vmatpush1.bf16.msra.mxu0 %v435
        %472 = vmatprep.subr.bf16.mxu0 0
        %473 = vmatpush1.bf16.msra.mxu0 %v436
        %474 = vmatprep.subr.bf16.mxu0 0
        %475 = vmatpush1.bf16.msra.mxu0 %v437
        %476 = vmatprep.subr.bf16.mxu0 0
        %477 = vmatpush1.bf16.msra.mxu0 %v438
        %478 = vmatprep.subr.bf16.mxu0 0
        %479 = vmatpush1.bf16.msra.mxu0 %v439
        %480 = vmatprep.subr.bf16.mxu0 0
        %481 = vmatpush1.bf16.msra.mxu0 %v440
        %482 = vmatprep.subr.bf16.mxu0 0
        %483 = vmatpush1.bf16.msra.mxu0 %v441
        %484 = vmatprep.subr.bf16.mxu0 0
        %485 = vmatpush1.bf16.msra.mxu0 %v442
        %486 = vmatprep.subr.bf16.mxu0 0
        %487 = vmatpush1.bf16.msra.mxu0 %v443
        %488 = vmatprep.subr.bf16.mxu0 0
        %489 = vmatpush1.bf16.msra.mxu0 %v444
        %490 = vmatprep.subr.bf16.mxu0 0
        %491 = vmatpush1.bf16.msra.mxu0 %v445
        %492 = vmatprep.subr.bf16.mxu0 0
        %493 = vmatpush1.bf16.msra.mxu0 %v446
        %494 = vmatprep.subr.bf16.mxu0 0
        %495 = vmatpush1.bf16.msra.mxu0 %v447
        %496 = vmatprep.mubr.bf16.mxu0 %v335
        %497 = vmatmul.mubr.bf16.gmra.mrb[0].mxu0 %v334
        %v498 = vpop.f32.mrb[0].mxu0
        %v499 = vadd.f32 0.0, %v498
        %v500 = vpop.f32.mrb[0].mxu0
        %v501 = vpop.f32.mrb[0].mxu0
        %v502 = vpop.f32.mrb[0].mxu0
        %503 = vdwg.mxu0
        %v504 = vld [vmem:[%s4] sm:$0xff]
        %vm505 = vcmask 64512
        %v507 = vsel %vm505, %v504, 0
        %509 = vmatprep.subr.mxu0 0.0
        %510 = vmatpush1.msra.mxu0 %v499
        %511 = vmatprep.subr.mxu0 0.0
        %512 = vmatpush1.msra.mxu0 0.0
        %513 = vmatprep.subr.mxu0 0.0
        %514 = vmatpush1.msra.mxu0 0.0
        %515 = vmatprep.subr.mxu0 0.0
        %516 = vmatpush1.msra.mxu0 0.0
        %517 = vmatprep.subr.mxu0 0.0
        %518 = vmatpush1.msra.mxu0 0.0
        %519 = vmatprep.subr.mxu0 0.0
        %520 = vmatpush1.msra.mxu0 0.0
        %521 = vmatprep.subr.mxu0 0.0
        %522 = vmatpush1.msra.mxu0 0.0
        %523 = vmatprep.subr.mxu0 0.0
        %524 = vmatpush1.msra.mxu0 0.0
        %525 = vmatprep.subr.mxu0 0.0
        %526 = vmatpush1.msra.mxu0 0.0
        %527 = vmatprep.subr.mxu0 0.0
        %528 = vmatpush1.msra.mxu0 0.0
        %529 = vmatprep.subr.mxu0 0.0
        %530 = vmatpush1.msra.mxu0 0.0
        %531 = vmatprep.subr.mxu0 0.0
        %532 = vmatpush1.msra.mxu0 0.0
        %533 = vmatprep.subr.mxu0 0.0
        %534 = vmatpush1.msra.mxu0 0.0
        %535 = vmatprep.subr.mxu0 0.0
        %536 = vmatpush1.msra.mxu0 0.0
        %537 = vmatprep.subr.mxu0 0.0
        %538 = vmatpush1.msra.mxu0 0.0
        %539 = vmatprep.subr.mxu0 0.0
        %540 = vmatpush1.msra.mxu0 0.0
        %541 = vmatprep.subr.mxu0 0.0
        %542 = vmatpush1.msra.mxu0 0.0
        %543 = vmatprep.subr.mxu0 0.0
        %544 = vmatpush1.msra.mxu0 0.0
        %545 = vmatprep.subr.mxu0 0.0
        %546 = vmatpush1.msra.mxu0 0.0
        %547 = vmatprep.subr.mxu0 0.0
        %548 = vmatpush1.msra.mxu0 0.0
        %549 = vmatprep.subr.mxu0 0.0
        %550 = vmatpush1.msra.mxu0 0.0
        %551 = vmatprep.subr.mxu0 0.0
        %552 = vmatpush1.msra.mxu0 0.0
        %553 = vmatprep.subr.mxu0 0.0
        %554 = vmatpush1.msra.mxu0 0.0
        %555 = vmatprep.subr.mxu0 0.0
        %556 = vmatpush1.msra.mxu0 0.0
        %557 = vmatprep.subr.mxu0 0.0
        %558 = vmatpush1.msra.mxu0 0.0
        %559 = vmatprep.subr.mxu0 0.0
        %560 = vmatpush1.msra.mxu0 0.0
        %561 = vmatprep.subr.mxu0 0.0
        %562 = vmatpush1.msra.mxu0 0.0
        %563 = vmatprep.subr.mxu0 0.0
        %564 = vmatpush1.msra.mxu0 0.0
        %565 = vmatprep.subr.mxu0 0.0
        %566 = vmatpush1.msra.mxu0 0.0
        %567 = vmatprep.subr.mxu0 0.0
        %568 = vmatpush1.msra.mxu0 0.0
        %569 = vmatprep.subr.mxu0 0.0
        %570 = vmatpush1.msra.mxu0 0.0
        %571 = vmatprep.subr.mxu0 0.0
        %572 = vmatpush1.msra.mxu0 0.0
        %573 = vmatprep.mubr.f32.mxu0 0.0
        %574 = vmatmul.mubr.f32.gmra.mrb[0].mxu0 %v507
        %v575 = vpop.f32.mrb[0].mxu0
        %v576 = vadd.f32 0.0, %v575
        %v577 = vpop.f32.mrb[0].mxu0
        %578 = vdwg.mxu0
        %vm579 = vcmask 261120
        %v580 = vsel %vm579, %v576, 0.0
        %581 = vadd.xlane.f32.xlu0 %v580
        %v582 = vpop.xlane.xlu0 %581
        %v583 = vrcp.pop 32.0
        %v584 = vmul.f32 %v582, %v583
        %v585 = vsub.f32 %v576, %v584
        %v586 = vmul.f32 %v585, %v585
        %v587 = vsel %vm579, %v586, 0.0
        %588 = vadd.xlane.f32.xlu0 %v587
        %v589 = vpop.xlane.xlu0 %588
        %v590 = vmul.f32 %v589, %v583
        %v591 = vadd.f32 %v590, 1e-05
        %v592 = vrsqrt.pop %v591
        %v593 = vmul.f32 %v585, %v592
        %v594 = vld [vmem:[%s5] sm:$0xff]
        %596 = vset.pattern.permute.xlu0 0
        %597 = vperm.xlu0 %596, %v594
        %v598 = vpop.permute.xlu0 %597
        %v600 = vmul.f32 %v593, %v598
        %v601 = vld [vmem:[%s6] sm:$0xff]
        %603 = vset.pattern.permute.xlu0 0
        %604 = vperm.xlu0 %603, %v601
        %v605 = vpop.permute.xlu0 %604
        %v607 = vadd.f32 %v600, %v605
        %v608 = vmax.f32 %v607, 0.0
        %v609 = vld [vmem:[%s7] sm:$0xff]
        %v611 = vsel %vm505, %v609, 0
        %613 = vmatprep.subr.mxu0 0.0
        %614 = vmatpush1.msra.mxu0 %v608
        %615 = vmatprep.subr.mxu0 0.0
        %616 = vmatpush1.msra.mxu0 0.0
        %617 = vmatprep.subr.mxu0 0.0
        %618 = vmatpush1.msra.mxu0 0.0
        %619 = vmatprep.subr.mxu0 0.0
        %620 = vmatpush1.msra.mxu0 0.0
        %621 = vmatprep.subr.mxu0 0.0
        %622 = vmatpush1.msra.mxu0 0.0
        %623 = vmatprep.subr.mxu0 0.0
        %624 = vmatpush1.msra.mxu0 0.0
        %625 = vmatprep.subr.mxu0 0.0
        %626 = vmatpush1.msra.mxu0 0.0
        %627 = vmatprep.subr.mxu0 0.0
        %628 = vmatpush1.msra.mxu0 0.0
        %629 = vmatprep.subr.mxu0 0.0
        %630 = vmatpush1.msra.mxu0 0.0
        %631 = vmatprep.subr.mxu0 0.0
        %632 = vmatpush1.msra.mxu0 0.0
        %633 = vmatprep.subr.mxu0 0.0
        %634 = vmatpush1.msra.mxu0 0.0
        %635 = vmatprep.subr.mxu0 0.0
        %636 = vmatpush1.msra.mxu0 0.0
        %637 = vmatprep.subr.mxu0 0.0
        %638 = vmatpush1.msra.mxu0 0.0
        %639 = vmatprep.subr.mxu0 0.0
        %640 = vmatpush1.msra.mxu0 0.0
        %641 = vmatprep.subr.mxu0 0.0
        %642 = vmatpush1.msra.mxu0 0.0
        %643 = vmatprep.subr.mxu0 0.0
        %644 = vmatpush1.msra.mxu0 0.0
        %645 = vmatprep.subr.mxu0 0.0
        %646 = vmatpush1.msra.mxu0 0.0
        %647 = vmatprep.subr.mxu0 0.0
        %648 = vmatpush1.msra.mxu0 0.0
        %649 = vmatprep.subr.mxu0 0.0
        %650 = vmatpush1.msra.mxu0 0.0
        %651 = vmatprep.subr.mxu0 0.0
        %652 = vmatpush1.msra.mxu0 0.0
        %653 = vmatprep.subr.mxu0 0.0
        %654 = vmatpush1.msra.mxu0 0.0
        %655 = vmatprep.subr.mxu0 0.0
        %656 = vmatpush1.msra.mxu0 0.0
        %657 = vmatprep.subr.mxu0 0.0
        %658 = vmatpush1.msra.mxu0 0.0
        %659 = vmatprep.subr.mxu0 0.0
        %660 = vmatpush1.msra.mxu0 0.0
        %661 = vmatprep.subr.mxu0 0.0
        %662 = vmatpush1.msra.mxu0 0.0
        %663 = vmatprep.subr.mxu0 0.0
        %664 = vmatpush1.msra.mxu0 0.0
        %665 = vmatprep.subr.mxu0 0.0
        %666 = vmatpush1.msra.mxu0 0.0
        %667 = vmatprep.subr.mxu0 0.0
        %668 = vmatpush1.msra.mxu0 0.0
        %669 = vmatprep.subr.mxu0 0.0
        %670 = vmatpush1.msra.mxu0 0.0
        %671 = vmatprep.subr.mxu0 0.0
        %672 = vmatpush1.msra.mxu0 0.0
        %673 = vmatprep.subr.mxu0 0.0
        %674 = vmatpush1.msra.mxu0 0.0
        %675 = vmatprep.subr.mxu0 0.0
        %676 = vmatpush1.msra.mxu0 0.0
        %677 = vmatprep.mubr.f32.mxu0 0.0
        %678 = vmatmul.mubr.f32.gmra.mrb[0].mxu0 %v611
        %v679 = vpop.f32.mrb[0].mxu0
        %v680 = vadd.f32 0.0, %v679
        %v681 = vpop.f32.mrb[0].mxu0
        %682 = vdwg.mxu0
        %v683 = vxor.u32 %v680, 2147483648
        %v684 = vmul.f32 %v683, 1.442695
        %v685 = vpow.pop %v684
        %v686 = vadd.f32 %v685, 1.0
        %v687 = vrcp.pop %v686
        %v688 = vmul.f32 1.0, %v687
        %v689 = vld [vmem:[%s8] sm:$0xff]
        %691 = vrot.lane.b32.xlu0 %v608, 112
        %v692 = vpop.permute.xlu0 %691
        %v695 = vsel %vm505, %v689, 0
        %697 = vmatprep.subr.mxu0 0.0
        %698 = vmatpush1.msra.mxu0 %v692
        %699 = vmatprep.subr.mxu0 0.0
        %700 = vmatpush1.msra.mxu0 0.0
        %701 = vmatprep.subr.mxu0 0.0
        %702 = vmatpush1.msra.mxu0 0.0
        %703 = vmatprep.subr.mxu0 0.0
        %704 = vmatpush1.msra.mxu0 0.0
        %705 = vmatprep.subr.mxu0 0.0
        %706 = vmatpush1.msra.mxu0 0.0
        %707 = vmatprep.subr.mxu0 0.0
        %708 = vmatpush1.msra.mxu0 0.0
        %709 = vmatprep.subr.mxu0 0.0
        %710 = vmatpush1.msra.mxu0 0.0
        %711 = vmatprep.subr.mxu0 0.0
        %712 = vmatpush1.msra.mxu0 0.0
        %713 = vmatprep.subr.mxu0 0.0
        %714 = vmatpush1.msra.mxu0 0.0
        %715 = vmatprep.subr.mxu0 0.0
        %716 = vmatpush1.msra.mxu0 0.0
        %717 = vmatprep.subr.mxu0 0.0
        %718 = vmatpush1.msra.mxu0 0.0
        %719 = vmatprep.subr.mxu0 0.0
        %720 = vmatpush1.msra.mxu0 0.0
        %721 = vmatprep.subr.mxu0 0.0
        %722 = vmatpush1.msra.mxu0 0.0
        %723 = vmatprep.subr.mxu0 0.0
        %724 = vmatpush1.msra.mxu0 0.0
        %725 = vmatprep.subr.mxu0 0.0
        %726 = vmatpush1.msra.mxu0 0.0
        %727 = vmatprep.subr.mxu0 0.0
        %728 = vmatpush1.msra.mxu0 0.0
        %729 = vmatprep.subr.mxu0 0.0
        %730 = vmatpush1.msra.mxu0 0.0
        %731 = vmatprep.subr.mxu0 0.0
        %732 = vmatpush1.msra.mxu0 0.0
        %733 = vmatprep.subr.mxu0 0.0
        %734 = vmatpush1.msra.mxu0 0.0
        %735 = vmatprep.subr.mxu0 0.0
        %736 = vmatpush1.msra.mxu0 0.0
        %737 = vmatprep.subr.mxu0 0.0
        %738 = vmatpush1.msra.mxu0 0.0
        %739 = vmatprep.subr.mxu0 0.0
        %740 = vmatpush1.msra.mxu0 0.0
        %741 = vmatprep.subr.mxu0 0.0
        %742 = vmatpush1.msra.mxu0 0.0
        %743 = vmatprep.subr.mxu0 0.0
        %744 = vmatpush1.msra.mxu0 0.0
        %745 = vmatprep.subr.mxu0 0.0
        %746 = vmatpush1.msra.mxu0 0.0
        %747 = vmatprep.subr.mxu0 0.0
        %748 = vmatpush1.msra.mxu0 0.0
        %749 = vmatprep.subr.mxu0 0.0
        %750 = vmatpush1.msra.mxu0 0.0
        %751 = vmatprep.subr.mxu0 0.0
        %752 = vmatpush1.msra.mxu0 0.0
        %753 = vmatprep.subr.mxu0 0.0
        %754 = vmatpush1.msra.mxu0 0.0
        %755 = vmatprep.subr.mxu0 0.0
        %756 = vmatpush1.msra.mxu0 0.0
        %757 = vmatprep.subr.mxu0 0.0
        %758 = vmatpush1.msra.mxu0 0.0
        %759 = vmatprep.subr.mxu0 0.0
        %760 = vmatpush1.msra.mxu0 0.0
        %761 = vmatprep.mubr.f32.mxu0 0.0
        %762 = vmatmul.mubr.f32.gmra.mrb[0].mxu0 %v695
        %v763 = vpop.f32.mrb[0].mxu0
        %v764 = vadd.f32 0.0, %v763
        %v765 = vpop.f32.mrb[0].mxu0
        %766 = vdwg.mxu0
        %v767 = vxor.u32 %v764, 2147483648
        %v768 = vmul.f32 %v767, 1.442695
        %v769 = vpow.pop %v768
        %v770 = vadd.f32 %v769, 1.0
        %v771 = vrcp.pop %v770
        %v772 = vmul.f32 1.0, %v771
        %v773 = vpack.c.bf16 %v688, %v688
        %v774 = vld [vmem:[%s2] sm:$0xff]
        %v775 = vld [vmem:[%s2 + $0x8] sm:$0xff]
        %v778 = vunpack.c.l.b16 %v774
        %v779 = vunpack.c.h.b16 %v774
        %v780 = vunpack.c.l.b16 %v775
        %v781 = vunpack.c.h.b16 %v775
        %v782 = vpack.c.b16 %v780, %v778
        %v783 = vpack.c.b16 %v781, %v779
        %vm786 = vcmask 130048
        %v788 = vsel %vm786, %v773, 0
        %790 = vmatprep.subr.bf16.mxu0 %v783
        %791 = vmatpush1.bf16.msra.mxu0 %v782
        %792 = vmatprep.subr.bf16.mxu0 0
        %793 = vmatpush1.bf16.msra.mxu0 0
        %794 = vmatprep.subr.bf16.mxu0 0
        %795 = vmatpush1.bf16.msra.mxu0 0
        %796 = vmatprep.subr.bf16.mxu0 0
        %797 = vmatpush1.bf16.msra.mxu0 0
        %798 = vmatprep.subr.bf16.mxu0 0
        %799 = vmatpush1.bf16.msra.mxu0 0
        %800 = vmatprep.subr.bf16.mxu0 0
        %801 = vmatpush1.bf16.msra.mxu0 0
        %802 = vmatprep.subr.bf16.mxu0 0
        %803 = vmatpush1.bf16.msra.mxu0 0
        %804 = vmatprep.subr.bf16.mxu0 0
        %805 = vmatpush1.bf16.msra.mxu0 0
        %806 = vmatprep.subr.bf16.mxu0 0
        %807 = vmatpush1.bf16.msra.mxu0 0
        %808 = vmatprep.subr.bf16.mxu0 0
        %809 = vmatpush1.bf16.msra.mxu0 0
        %810 = vmatprep.subr.bf16.mxu0 0
        %811 = vmatpush1.bf16.msra.mxu0 0
        %812 = vmatprep.subr.bf16.mxu0 0
        %813 = vmatpush1.bf16.msra.mxu0 0
        %814 = vmatprep.subr.bf16.mxu0 0
        %815 = vmatpush1.bf16.msra.mxu0 0
        %816 = vmatprep.subr.bf16.mxu0 0
        %817 = vmatpush1.bf16.msra.mxu0 0
        %818 = vmatprep.subr.bf16.mxu0 0
        %819 = vmatpush1.bf16.msra.mxu0 0
        %820 = vmatprep.subr.bf16.mxu0 0
        %821 = vmatpush1.bf16.msra.mxu0 0
        %822 = vmatprep.mubr.bf16.mxu0 0
        %823 = vmatmul.mubr.bf16.gmra.mrb[0].mxu0 %v788
        %v824 = vpop.f32.mrb[0].mxu0
        %v825 = vadd.f32 0.0, %v824
        %v826 = vpop.f32.mrb[0].mxu0
        %v827 = vadd.f32 0.0, %v826
        %v828 = vpop.f32.mrb[0].mxu0
        %v829 = vpop.f32.mrb[0].mxu0
        %830 = vdwg.mxu0
        %v831 = vpack.c.bf16 %v772, %v772
        %v832 = vld [vmem:[%s3] sm:$0xff]
        %v833 = vld [vmem:[%s3 + $0x8] sm:$0xff]
        %v836 = vunpack.c.l.b16 %v832
        %v837 = vunpack.c.h.b16 %v832
        %v838 = vunpack.c.l.b16 %v833
        %v839 = vunpack.c.h.b16 %v833
        %v840 = vpack.c.b16 %v838, %v836
        %v841 = vpack.c.b16 %v839, %v837
        %v845 = vsel %vm786, %v831, 0
        %847 = vmatprep.subr.bf16.mxu0 %v841
        %848 = vmatpush1.bf16.msra.mxu0 %v840
        %849 = vmatprep.subr.bf16.mxu0 0
        %850 = vmatpush1.bf16.msra.mxu0 0
        %851 = vmatprep.subr.bf16.mxu0 0
        %852 = vmatpush1.bf16.msra.mxu0 0
        %853 = vmatprep.subr.bf16.mxu0 0
        %854 = vmatpush1.bf16.msra.mxu0 0
        %855 = vmatprep.subr.bf16.mxu0 0
        %856 = vmatpush1.bf16.msra.mxu0 0
        %857 = vmatprep.subr.bf16.mxu0 0
        %858 = vmatpush1.bf16.msra.mxu0 0
        %859 = vmatprep.subr.bf16.mxu0 0
        %860 = vmatpush1.bf16.msra.mxu0 0
        %861 = vmatprep.subr.bf16.mxu0 0
        %862 = vmatpush1.bf16.msra.mxu0 0
        %863 = vmatprep.subr.bf16.mxu0 0
        %864 = vmatpush1.bf16.msra.mxu0 0
        %865 = vmatprep.subr.bf16.mxu0 0
        %866 = vmatpush1.bf16.msra.mxu0 0
        %867 = vmatprep.subr.bf16.mxu0 0
        %868 = vmatpush1.bf16.msra.mxu0 0
        %869 = vmatprep.subr.bf16.mxu0 0
        %870 = vmatpush1.bf16.msra.mxu0 0
        %871 = vmatprep.subr.bf16.mxu0 0
        %872 = vmatpush1.bf16.msra.mxu0 0
        %873 = vmatprep.subr.bf16.mxu0 0
        %874 = vmatpush1.bf16.msra.mxu0 0
        %875 = vmatprep.subr.bf16.mxu0 0
        %876 = vmatpush1.bf16.msra.mxu0 0
        %877 = vmatprep.subr.bf16.mxu0 0
        %878 = vmatpush1.bf16.msra.mxu0 0
        %879 = vmatprep.mubr.bf16.mxu0 0
        %880 = vmatmul.mubr.bf16.gmra.mrb[0].mxu0 %v845
        %v881 = vpop.f32.mrb[0].mxu0
        %v882 = vadd.f32 0.0, %v881
        %v883 = vpop.f32.mrb[0].mxu0
        %v884 = vadd.f32 0.0, %v883
        %v885 = vpop.f32.mrb[0].mxu0
        %v886 = vpop.f32.mrb[0].mxu0
        %887 = vdwg.mxu0
        %v888 = vmul.f32 %v825, %v882
        %v889 = vmul.f32 %v827, %v884
        %v890 = vmul.f32 %v332, %v888
        %v891 = vmul.f32 %v333, %v889
        %892 = vst [vmem:[%s325] sm:$0xff] %v890
        %893 = vst [vmem:[%s325 + $0x8] sm:$0xff] %v891
        %s894 = sand.u32 %s225, 1
        %s895 = scalar_lea.sflag [#allocation3], %s894
        %s896 = sand.u32 %s225, 1
        %s897 = smul.addr %s896, 16
        %s898 = scalar_lea.vmem [#allocation2], %s897
        // Predicated region
        $region57: #{tpu_custom_call.1} parent=55 // pred_check
          %p899 = pneg %p235
        $region58: #{tpu_custom_call.1} parent=55 // pred_check_branch
          %901 = sbr.rel (%p899) target = $region60
        $region59: #{tpu_custom_call.1} parent=55 // pred_region
          %s903 = ssub.s32 256, 256
          %904 = vsyncadd %s895, %s903
          %s905 = smul.addr %s23, 2
          %s906 = smul.addr %s905, 128
          %s907 = scalar_lea.hbm %s9, %s906
          %s909 = sshll.u32 %s898, 4
          %s910 = int_to_ptr.vmem [resolvable:$true] %s909
          %912 = dma.vmem_to_hbm [thread:$0]  %s910, 256, %s907, %s895
        $region60: #{tpu_custom_call.1} parent=55 // pred_fallthru
          _
      $region56: #{tpu_custom_call.1} parent=5 // pred_fallthru
        _
      %p913 = scmp.le.s32.totalorder 2, %s18
      // Predicated region
      $region61: #{tpu_custom_call.1} parent=5 // pred_check
        %p914 = pneg %p913
      $region62: #{tpu_custom_call.1} parent=5 // pred_check_branch
        %916 = sbr.rel (%p914) target = $region64
      $region63: #{tpu_custom_call.1} parent=5 // pred_region
        %s917 = ssub.s32 %s18, 2
        // Predicated region
        $region65: #{tpu_custom_call.1} parent=63 // pred_check
          %p918 = pneg %p241
        $region66: #{tpu_custom_call.1} parent=63 // pred_check_branch
          %920 = sbr.rel (%p918) target = $region68
        $region67: #{tpu_custom_call.1} parent=63 // pred_region
          %s921 = sand.u32 %s226, 1
          %s922 = scalar_lea.sflag [#allocation3], %s921
          %s923 = sand.u32 %s226, 1
          %s924 = smul.addr %s923, 16
          %s925 = scalar_lea.vmem [#allocation2], %s924
          %926 = dma.done %s922, 256
        $region68: #{tpu_custom_call.1} parent=63 // pred_fallthru
          _
      $region64: #{tpu_custom_call.1} parent=5 // pred_fallthru
        _
    $region6: #{tpu_custom_call.1} parent=1 // loop_footer
      %s22 = sadd.s32 1, %s18
    $region7: #{tpu_custom_call.1} parent=1 // loop_footer_branch
      %17 = sbr.rel target = $region3
    $region8: #{tpu_custom_call.1} parent=1 // loop_exit
      _
    %927 = vsyncpa [#allocation3], 1
    %s928 = scalar_lea.sflag [#allocation3], 1
    %929 = vsyncpa %s928, 1

</llo_original>
